<compile_context>
chip_gen: v5e
topology: v5e:2x2
jax: 0.10.0
libtpu: 0.0.40
codegen_flags: <defaults>
</compile_context>

<pallas_src>
import functools
from typing import NamedTuple

import jax
import jax.numpy as jnp
from jax.experimental import pallas as pl
from jax.experimental.pallas import tpu as pltpu


# ---------------------------------------------------------------------------
# Small helpers
# ---------------------------------------------------------------------------

def _round_up(x: int, m: int) -> int:
    return (x + m - 1) // m * m


def _vmem_capacity_bytes() -> int:
    """Physical VMEM per TensorCore; conservative 64 MiB fallback (v7x)."""
    try:
        return int(pltpu.get_tpu_info().vmem_capacity_bytes)
    except Exception:
        return 64 << 20


def _mxu_width() -> int:
    """256 for v6e/v7x-class chips, 128 for v5e and older."""
    try:
        kind = jax.devices()[0].device_kind.lower()
    except Exception:
        return 256
    if any(tag in kind for tag in ("v2", "v3", "v4", "v5")):
        return 128
    return 256


def _vmem_estimate(batch, obs, hid, block_act, wt_itemsize, single_buffer=True):
    """Rough VMEM footprint (bytes) of the pipelined kernel."""
    inv = 1 if single_buffer else 2          # x / W1 / b1 buffering
    return (inv * (batch * obs + obs * hid) * wt_itemsize
            + inv * hid * 4                                  # b1 (f32)
            + 2 * hid * block_act * wt_itemsize              # W2 tile (dbl buf)
            + 2 * block_act * 4                              # b2 tile
            + 2 * batch * block_act * 4                      # out tile
            + batch * hid * wt_itemsize)                     # h scratch


def _pick_block_act(batch_hint, obs, hid, action_space, wt_itemsize) -> int:
    """Column-tile width: MXU-width matched, capped by VMEM, >= 128 lanes."""
    a_ceiling = _round_up(max(action_space, 1), 128)
    cand = min(_mxu_width(), a_ceiling)
    budget = min(_vmem_capacity_bytes() // 2, 32 << 20)   # stay under scoped default
    while cand > 128 and _vmem_estimate(batch_hint, obs, hid, cand,
                                        wt_itemsize, True) > budget:
        cand //= 2
    return max(cand, 128)


_SINGLE_BUFFER_OK = None


def _single_buffer_supported() -> bool:
    """One-time probe: does this JAX build accept pipeline_mode=pl.Buffered(1)?"""
    global _SINGLE_BUFFER_OK
    if _SINGLE_BUFFER_OK is None:
        try:
            def _probe_kernel(x_ref, o_ref):
                o_ref[...] = x_ref[...]

            out = pl.pallas_call(
                _probe_kernel,
                out_shape=jax.ShapeDtypeStruct((8, 128), jnp.float32),
                grid=(1,),
                in_specs=[pl.BlockSpec((8, 128), lambda i: (0, 0),
                                       pipeline_mode=pl.Buffered(1))],
                out_specs=pl.BlockSpec((8, 128), lambda i: (0, 0)),
            )(jnp.zeros((8, 128), jnp.float32))
            jax.block_until_ready(out)
            _SINGLE_BUFFER_OK = True
        except Exception:
            _SINGLE_BUFFER_OK = False
    return _SINGLE_BUFFER_OK


# ---------------------------------------------------------------------------
# Kernel
# ---------------------------------------------------------------------------

def policy_kernel(x_ref, w1_ref, b1_ref, w2_ref, b2_ref, o_ref, h_ref):
    # Layer 1 once per outer grid step (once per core under a megacore split),
    # held in VMEM scratch across the inner column-tile axis — no recompute.
    @pl.when(pl.program_id(1) == 0)
    def _():
        h = jnp.dot(x_ref[...], w1_ref[...],
                    preferred_element_type=jnp.float32) + b1_ref[...]
        h_ref[...] = jnp.maximum(h, 0.0).astype(h_ref.dtype)

    # Layer 2 for this column tile: h @ W2[:, tile] + b2[tile] (f32 accumulate).
    logits = (jnp.dot(h_ref[...], w2_ref[...],
                      preferred_element_type=jnp.float32) + b2_ref[...])

    # softmax over dim=0 (batch axis) — matches F.softmax(actions, dim=0).
    # Columns are independent, so a per-tile softmax is exact.  Zero-padded
    # columns give finite logits (=0) and are sliced off outside the kernel.
    m = jnp.max(logits, axis=0, keepdims=True)
    e = jnp.exp(logits - m)
    denom = jnp.sum(e, axis=0, keepdims=True)
    # approx=True -> EUP vrcp slot (otherwise idle); ~2^-12 relative error.
    o_ref[...] = (e * pl.reciprocal(denom, approx=True)).astype(o_ref.dtype)


# ---------------------------------------------------------------------------
# Parameter preparation (one-time) and forward wrapper (per step)
# ---------------------------------------------------------------------------

class PolicyParams(NamedTuple):
    w1: jax.Array       # (OBS, HID), matmul dtype (resident bf16 in production)
    b1: jax.Array       # (1, HID), f32
    w2: jax.Array       # (HID, A_pad), matmul dtype, zero-padded columns
    b2: jax.Array       # (1, A_pad), f32, zero-padded
    action_space: int   # true A (for slicing off the padding)
    block_act: int      # lane-dense column-tile width


def prepare_params(w1, b1, w2, b2, *, matmul_dtype=jnp.float32,
                   block_act=None, batch_hint=128) -> PolicyParams:
    """One-time cast + pad of the weights (do NOT repeat per step)."""
    obs, hid = w1.shape
    action_space = w2.shape[1]
    wt_itemsize = jnp.dtype(matmul_dtype).itemsize
    if block_act is None:
        block_act = _pick_block_act(batch_hint, obs, hid, action_space, wt_itemsize)
    a_pad = _round_up(action_space, block_act)
    if a_pad != action_space:
        w2 = jnp.pad(w2, ((0, 0), (0, a_pad - action_space)))
        b2 = jnp.pad(b2, ((0, 0), (0, a_pad - action_space)))
    return PolicyParams(
        w1=w1.astype(matmul_dtype),
        b1=b1.astype(jnp.float32),
        w2=w2.astype(matmul_dtype),
        b2=b2.astype(jnp.float32),
        action_space=action_space,
        block_act=block_act,
    )


@functools.partial(jax.jit, static_argnames=(
    "action_space", "block_act", "n_outer", "n_inner", "out_dtype",
    "single_buffer", "vmem_limit_bytes"))
def _policy_forward_impl(x, w1, b1, w2, b2, *, action_space, block_act,
                         n_outer, n_inner, out_dtype, single_buffer,
                         vmem_limit_bytes):
    batch, obs = x.shape
    hid = w1.shape[1]
    a_pad = w2.shape[1]
    # Cheap per-step activation cast; weights are already resident in the
    # matmul dtype (no per-call weight cast / pad = no extra HBM round trip).
    x = x.astype(w1.dtype)

    def inv_spec(shape):
        # Grid-invariant block: single-buffer it if supported (halves its VMEM).
        if single_buffer:
            return pl.BlockSpec(shape, lambda c, j: (0, 0),
                                pipeline_mode=pl.Buffered(1))
        return pl.BlockSpec(shape, lambda c, j: (0, 0))

    col = lambda c, j: (0, c * n_inner + j)

    out = pl.pallas_call(
        policy_kernel,
        out_shape=jax.ShapeDtypeStruct((batch, a_pad), out_dtype),
        grid_spec=pltpu.PrefetchScalarGridSpec(
            num_scalar_prefetch=0,
            grid=(n_outer, n_inner),
            in_specs=[
                inv_spec((batch, obs)),                       # x   (invariant)
                inv_spec((obs, hid)),                         # W1  (invariant)
                inv_spec((1, hid)),                           # b1  (invariant)
                pl.BlockSpec((hid, block_act), col),          # W2 column tile
                pl.BlockSpec((1, block_act), col),            # b2 column tile
            ],
            out_specs=pl.BlockSpec((batch, block_act), col),
            scratch_shapes=[pltpu.VMEM((batch, hid), w2.dtype)],  # h scratch
        ),
        compiler_params=pltpu.CompilerParams(
            # Outer axis = independent column-tile groups (core split on v7x);
            # inner axis reuses the h scratch -> "arbitrary".
            dimension_semantics=("parallel", "arbitrary"),
            vmem_limit_bytes=vmem_limit_bytes,
        ),
    )(x, w1, b1, w2, b2)

    # Slice off the lane padding inside the same jit (no extra dispatch).
    return out[:, :action_space]


def policy_forward(x, params: PolicyParams, *, out_dtype=jnp.float32):
    """PolicyNetwork forward: softmax(relu(x@W1+b1)@W2+b2, dim=0)."""
    w1, b1, w2, b2, action_space, block_act = params
    batch, obs = x.shape
    hid = w1.shape[1]
    a_pad = w2.shape[1]
    n_tiles = a_pad // block_act
    n_outer = 2 if (n_tiles >= 2 and n_tiles % 2 == 0) else 1
    n_inner = n_tiles // n_outer

    single_buffer = _single_buffer_supported()
    need = _vmem_estimate(batch, obs, hid, block_act,
                          jnp.dtype(w2.dtype).itemsize, single_buffer)
    cap = _vmem_capacity_bytes()
    vmem_limit = int(min(cap - (2 << 20), max(32 << 20, 2 * need + (2 << 20))))

    return _policy_forward_impl(
        x, w1, b1, w2, b2,
        action_space=action_space, block_act=block_act,
        n_outer=n_outer, n_inner=n_inner, out_dtype=out_dtype,
        single_buffer=single_buffer, vmem_limit_bytes=vmem_limit)


# ---------------------------------------------------------------------------
# Init + reference + demo
# ---------------------------------------------------------------------------

def init_params(key, observation_space, action_space, hidden_dim):
    """Deterministic init mimicking nn.Linear's U(-1/sqrt(fan_in), 1/sqrt(fan_in))."""
    k1, k2, k3, k4 = jax.random.split(key, 4)
    bound1 = 1.0 / jnp.sqrt(observation_space)
    bound2 = 1.0 / jnp.sqrt(hidden_dim)
    w1 = jax.random.uniform(k1, (observation_space, hidden_dim), jnp.float32,
                            -bound1, bound1)
    b1 = jax.random.uniform(k2, (1, hidden_dim), jnp.float32, -bound1, bound1)
    w2 = jax.random.uniform(k3, (hidden_dim, action_space), jnp.float32,
                            -bound2, bound2)
    b2 = jax.random.uniform(k4, (1, action_space), jnp.float32, -bound2, bound2)
    return w1, b1, w2, b2


def reference_forward(x, w1, b1, w2, b2):
    h = jnp.maximum(x @ w1 + b1, 0.0)
    logits = h @ w2 + b2
    return jax.nn.softmax(logits, axis=0)   # dim=0, matching the torch module


if __name__ == "__main__":
    # Small shapes consistent with the module's forward:
    #   batch=2, observation_space=8, hidden_dim=32, action_space=4
    # NOTE: at these shapes the call is ~100% fixed-overhead bound; the
    # production lever is batching B >= 128 env steps per call (supported).
    B, OBS, HID, ACT = 2, 8, 32, 4

    key = jax.random.PRNGKey(0)
    kx, kp = jax.random.split(key)
    x = jax.random.normal(kx, (B, OBS), dtype=jnp.float32)
    w1, b1, w2, b2 = init_params(kp, OBS, ACT, HID)

    ref = reference_forward(x, w1, b1, w2, b2)

    # f32 weights path (tolerance loosened slightly for the approx reciprocal).
    params_f32 = prepare_params(w1, b1, w2, b2, matmul_dtype=jnp.float32)
    out = jax.block_until_ready(policy_forward(x, params_f32))
    assert out.shape == (B, ACT)
    assert jnp.allclose(out, ref, atol=2e-3, rtol=2e-3), "mismatch vs JAX reference (f32)"
    # softmax over dim=0: each column sums to ~1 (only to ~2^-12: approx vrcp)
    assert jnp.allclose(jnp.sum(out, axis=0), jnp.ones((ACT,)), atol=2e-3)

    # Persistent bf16 weights path (the production HBM/MXU win on all gens;
    # bias + softmax math stay f32, so v5e's missing bf16 VPU/EUP is fine).
    # h is cast to bf16 before the second matmul (f32 accumulate) -> ~1e-2 err.
    params_bf16 = prepare_params(w1, b1, w2, b2, matmul_dtype=jnp.bfloat16)
    out_bf16 = jax.block_until_ready(policy_forward(x, params_bf16))
    assert out_bf16.shape == (B, ACT)
    assert jnp.allclose(out_bf16, ref, atol=3e-2, rtol=3e-2), "mismatch vs JAX reference (bf16)"

    print("KERNEL_OK")
</pallas_src>

<mosaic_0001>
module attributes {stable_mosaic.version = 11 : i64} {
  func.func @_probe_kernel(%arg0: i32, %arg1: memref<8x128xf32, #tpu.memory_space<vmem>>, %arg2: memref<8x128xf32, #tpu.memory_space<vmem>>) attributes {dimension_semantics = [#tpu.dimension_semantics<arbitrary>], iteration_bounds = array<i64: 1>, scalar_prefetch = 0 : i64, scratch_operands = 0 : i64, tpu.core_type = #tpu.core_type<tc>, window_params = [{pipeline_mode = #tpu.pipeline_mode<synchronous>, transform_indices = @transform_0, window_bounds = array<i64: 8, 128>}, {pipeline_mode = #tpu.pipeline_mode<synchronous>, transform_indices = @transform_1, window_bounds = array<i64: 8, 128>}]} {
    %c0 = arith.constant 0 : index
    %c0_0 = arith.constant 0 : index
    %0 = vector.load %arg1[%c0, %c0_0] : memref<8x128xf32, #tpu.memory_space<vmem>>, vector<8x128xf32>
    %c0_1 = arith.constant 0 : index
    %c0_2 = arith.constant 0 : index
    %1 = vector.load %arg2[%c0_1, %c0_2] : memref<8x128xf32, #tpu.memory_space<vmem>>, vector<8x128xf32>
    tpu.vector_store %arg2[%c0_1, %c0_2], %0 {strides = array<i32>} : memref<8x128xf32, #tpu.memory_space<vmem>>, vector<8x128xf32>,
    return
  }
  func.func @transform_0(%arg0: i32) -> (i32, i32) {
    %c0_i32 = arith.constant 0 : i32
    %c0_i32_0 = arith.constant 0 : i32
    %c0_i32_1 = arith.constant 0 : i32
    return %c0_i32, %c0_i32_0 : i32, i32
  }
  func.func @transform_1(%arg0: i32) -> (i32, i32) {
    %c0_i32 = arith.constant 0 : i32
    %c0_i32_0 = arith.constant 0 : i32
    %c0_i32_1 = arith.constant 0 : i32
    return %c0_i32, %c0_i32_0 : i32, i32
  }
}

module attributes {stable_mosaic.version = 11 : i64} {
  func.func @policy_kernel(%arg0: i32, %arg1: i32, %arg2: memref<2x8xf32, #tpu.memory_space<vmem>>, %arg3: memref<8x32xf32, #tpu.memory_space<vmem>>, %arg4: memref<1x32xf32, #tpu.memory_space<vmem>>, %arg5: memref<32x128xf32, #tpu.memory_space<vmem>>, %arg6: memref<1x128xf32, #tpu.memory_space<vmem>>, %arg7: memref<2x128xf32, #tpu.memory_space<vmem>>, %arg8: memref<2x32xf32, #tpu.memory_space<vmem>>) attributes {dimension_semantics = [#tpu.dimension_semantics<parallel>, #tpu.dimension_semantics<arbitrary>], iteration_bounds = array<i64: 1, 1>, scalar_prefetch = 0 : i64, scratch_operands = 1 : i64, tpu.core_type = #tpu.core_type<tc>, window_params = [{pipeline_mode = #tpu.pipeline_mode<synchronous>, transform_indices = @transform_0, window_bounds = array<i64: 2, 8>}, {pipeline_mode = #tpu.pipeline_mode<synchronous>, transform_indices = @transform_1, window_bounds = array<i64: 8, 32>}, {pipeline_mode = #tpu.pipeline_mode<synchronous>, transform_indices = @transform_2, window_bounds = array<i64: 1, 32>}, {transform_indices = @transform_3, window_bounds = array<i64: 32, 128>}, {transform_indices = @transform_4, window_bounds = array<i64: 1, 128>}, {transform_indices = @transform_5, window_bounds = array<i64: 2, 128>}]} {
    %c0_i32 = arith.constant 0 : i32
    %0 = arith.cmpi eq, %arg1, %c0_i32 : i32
    %1 = arith.extui %0 : i1 to i32
    %c0_i32_0 = arith.constant 0 : i32
    %2 = arith.cmpi ne, %1, %c0_i32_0 : i32
    scf.if %2 {
      %c0_10 = arith.constant 0 : index
      %c0_11 = arith.constant 0 : index
      %20 = vector.load %arg2[%c0_10, %c0_11] : memref<2x8xf32, #tpu.memory_space<vmem>>, vector<2x8xf32>
      %c0_12 = arith.constant 0 : index
      %c0_13 = arith.constant 0 : index
      %21 = vector.load %arg3[%c0_12, %c0_13] : memref<8x32xf32, #tpu.memory_space<vmem>>, vector<8x32xf32>
      %cst_14 = arith.constant dense<0.000000e+00> : vector<2x32xf32>
      %22 = tpu.matmul %20, %21, %cst_14 {dimension_numbers = #tpu.dot_dimension_numbers<[1], [0], [0], [1], [0, 0, 1, 1], [], []>} : vector<2x8xf32>, vector<8x32xf32>, vector<2x32xf32> -> vector<2x32xf32>
      %c0_15 = arith.constant 0 : index
      %c0_16 = arith.constant 0 : index
      %23 = vector.load %arg4[%c0_15, %c0_16] : memref<1x32xf32, #tpu.memory_space<vmem>>, vector<1x32xf32>
      %24 = vector.broadcast %23 : vector<1x32xf32> to vector<2x32xf32>
      %25 = arith.addf %22, %24 : vector<2x32xf32>
      %cst_17 = arith.constant 0.000000e+00 : f32
      %26 = vector.broadcast %cst_17 : f32 to vector<2x32xf32>
      %27 = arith.maximumf %25, %26 : vector<2x32xf32>
      %c0_18 = arith.constant 0 : index
      %c0_19 = arith.constant 0 : index
      %28 = vector.load %arg8[%c0_18, %c0_19] : memref<2x32xf32, #tpu.memory_space<vmem>>, vector<2x32xf32>
      tpu.vector_store %arg8[%c0_18, %c0_19], %27 {strides = array<i32>} : memref<2x32xf32, #tpu.memory_space<vmem>>, vector<2x32xf32>,
    } else {
    }
    %c0 = arith.constant 0 : index
    %c0_1 = arith.constant 0 : index
    %3 = vector.load %arg8[%c0, %c0_1] : memref<2x32xf32, #tpu.memory_space<vmem>>, vector<2x32xf32>
    %c0_2 = arith.constant 0 : index
    %c0_3 = arith.constant 0 : index
    %4 = vector.load %arg5[%c0_2, %c0_3] : memref<32x128xf32, #tpu.memory_space<vmem>>, vector<32x128xf32>
    %cst = arith.constant dense<0.000000e+00> : vector<2x128xf32>
    %5 = tpu.matmul %3, %4, %cst {dimension_numbers = #tpu.dot_dimension_numbers<[1], [0], [0], [1], [0, 0, 1, 1], [], []>} : vector<2x32xf32>, vector<32x128xf32>, vector<2x128xf32> -> vector<2x128xf32>
    %c0_4 = arith.constant 0 : index
    %c0_5 = arith.constant 0 : index
    %6 = vector.load %arg6[%c0_4, %c0_5] : memref<1x128xf32, #tpu.memory_space<vmem>>, vector<1x128xf32>
    %7 = vector.broadcast %6 : vector<1x128xf32> to vector<2x128xf32>
    %8 = arith.addf %5, %7 : vector<2x128xf32>
    %cst_6 = arith.constant dense<0xFF800000> : vector<128xf32>
    %9 = vector.multi_reduction <maximumf>, %8, %cst_6 [0] : vector<2x128xf32> to vector<128xf32>
    %10 = vector.shape_cast %9 : vector<128xf32> to vector<1x128xf32>
    %11 = vector.broadcast %10 : vector<1x128xf32> to vector<2x128xf32>
    %12 = arith.subf %8, %11 : vector<2x128xf32>
    %13 = math.exp %12 : vector<2x128xf32>
    %cst_7 = arith.constant dense<0.000000e+00> : vector<128xf32>
    %14 = vector.multi_reduction <add>, %13, %cst_7 [0] : vector<2x128xf32> to vector<128xf32>
    %15 = vector.shape_cast %14 : vector<128xf32> to vector<1x128xf32>
    %16 = tpu.reciprocal %15 {approx = true} : vector<1x128xf32> -> vector<1x128xf32>
    %17 = vector.broadcast %16 : vector<1x128xf32> to vector<2x128xf32>
    %18 = arith.mulf %13, %17 : vector<2x128xf32>
    %c0_8 = arith.constant 0 : index
    %c0_9 = arith.constant 0 : index
    %19 = vector.load %arg7[%c0_8, %c0_9] : memref<2x128xf32, #tpu.memory_space<vmem>>, vector<2x128xf32>
    tpu.vector_store %arg7[%c0_8, %c0_9], %18 {strides = array<i32>} : memref<2x128xf32, #tpu.memory_space<vmem>>, vector<2x128xf32>,
    return
  }
  func.func @transform_0(%arg0: i32, %arg1: i32) -> (i32, i32) {
    %c0_i32 = arith.constant 0 : i32
    %c0_i32_0 = arith.constant 0 : i32
    %c0_i32_1 = arith.constant 0 : i32
    return %c0_i32, %c0_i32_0 : i32, i32
  }
  func.func @transform_1(%arg0: i32, %arg1: i32) -> (i32, i32) {
    %c0_i32 = arith.constant 0 : i32
    %c0_i32_0 = arith.constant 0 : i32
    %c0_i32_1 = arith.constant 0 : i32
    return %c0_i32, %c0_i32_0 : i32, i32
  }
  func.func @transform_2(%arg0: i32, %arg1: i32) -> (i32, i32) {
    %c0_i32 = arith.constant 0 : i32
    %c0_i32_0 = arith.constant 0 : i32
    %c0_i32_1 = arith.constant 0 : i32
    return %c0_i32, %c0_i32_0 : i32, i32
  }
  func.func @transform_3(%arg0: i32, %arg1: i32) -> (i32, i32) {
    %c1_i32 = arith.constant 1 : i32
    %0 = arith.muli %arg0, %c1_i32 : i32
    %1 = arith.addi %0, %arg1 : i32
    %c0_i32 = arith.constant 0 : i32
    %c0_i32_0 = arith.constant 0 : i32
    return %c0_i32, %1 : i32, i32
  }
  func.func @transform_4(%arg0: i32, %arg1: i32) -> (i32, i32) {
    %c1_i32 = arith.constant 1 : i32
    %0 = arith.muli %arg0, %c1_i32 : i32
    %1 = arith.addi %0, %arg1 : i32
    %c0_i32 = arith.constant 0 : i32
    %c0_i32_0 = arith.constant 0 : i32
    return %c0_i32, %1 : i32, i32
  }
  func.func @transform_5(%arg0: i32, %arg1: i32) -> (i32, i32) {
    %c1_i32 = arith.constant 1 : i32
    %0 = arith.muli %arg0, %c1_i32 : i32
    %1 = arith.addi %0, %arg1 : i32
    %c0_i32 = arith.constant 0 : i32
    %c0_i32_0 = arith.constant 0 : i32
    return %c0_i32, %1 : i32, i32
  }
}

</mosaic_0001>

<llo_original>
// kernel: tpu_custom_call.1
$region0: #{tpu_custom_call.1}
  #allocation0 [shape = 'u32[]', space=smem, size = 0x4, offset = 0x4, fixed_abs, tag = 'smem constant byte address 0x4 - core index']
  #allocation1 [shape = 'u32[72,128]{1,0:T(1,128)}', space=vmem, size = 0x9000, scoped, tag = 'internal scratch']
  %s0 = inlined_call_operand.hbm [shape: f32[8,128], index: 0, kind: input, shape index: {}]
  %s1 = inlined_call_operand.hbm [shape: f32[8,128], index: 1, kind: output, shape index: {}]
  %s2 = sld [smem:[#allocation0]]
  $region18: #{tpu_custom_call.1} parent=0
    _
  %s4 = ssub.s32 1, %s2
  %s5 = scalar_select 0, %s4, %s2
  $region1: #{tpu_custom_call.1} parent=0
    #allocation2 [shape = 'u8[4096]{0}', space=vmem, size = 0x1000, scoped, tag = 'input window, operand 0, single buffered']
    #allocation3 [shape = 's32[1]{0}', space=sflag, size = 0x4, scoped, tag = 'scoped memory for tpu_custom_call.1']
    #allocation4 [shape = 's32[1]{0}', space=sflag, size = 0x4, scoped, tag = 'scoped memory for tpu_custom_call.1']
    #allocation5 [shape = 'u8[4096]{0}', space=vmem, size = 0x1000, scoped, tag = 'output window, operand 0, single buffered']
    %6 = vsyncpa [#allocation3], 0
    %7 = vsyncpa [#allocation4], 0
    // Predicated region
    $region2: #{tpu_custom_call.1} parent=1 // pred_check
      _
    $region3: #{tpu_custom_call.1} parent=1 // pred_check_branch
      %9 = sbr.rel (0) target = $region5
    $region4: #{tpu_custom_call.1} parent=1 // pred_region
      %11 = vsyncadd [#allocation3], 0
      %s13 = sshll.u32 %s0, 4
      %s14 = int_to_ptr.hbm [resolvable:$true] %s13
      %s15 = sshll.u32 [#allocation2], 4
      %s16 = int_to_ptr.vmem [resolvable:$true] %s15
      %18 = dma.hbm_to_vmem [thread:$0]  %s14, 128, %s16, [#allocation3]
    $region5: #{tpu_custom_call.1} parent=1 // pred_fallthru
      _
    // Predicated region
    $region6: #{tpu_custom_call.1} parent=1 // pred_check
      _
    $region7: #{tpu_custom_call.1} parent=1 // pred_check_branch
      %20 = sbr.rel (0) target = $region9
    $region8: #{tpu_custom_call.1} parent=1 // pred_region
      %22 = dma.done [#allocation3], 128
    $region9: #{tpu_custom_call.1} parent=1 // pred_fallthru
      _
    %v23 = vld [vmem:[#allocation2] sm:$0xff]
    %24 = vst [vmem:[#allocation5] sm:$0xff] %v23
    // Predicated region
    $region10: #{tpu_custom_call.1} parent=1 // pred_check
      _
    $region11: #{tpu_custom_call.1} parent=1 // pred_check_branch
      %26 = sbr.rel (0) target = $region13
    $region12: #{tpu_custom_call.1} parent=1 // pred_region
      %28 = vsyncadd [#allocation4], 0
      %s30 = sshll.u32 [#allocation5], 4
      %s31 = int_to_ptr.vmem [resolvable:$true] %s30
      %s32 = sshll.u32 %s1, 4
      %s33 = int_to_ptr.hbm [resolvable:$true] %s32
      %35 = dma.vmem_to_hbm [thread:$0]  %s31, 128, %s33, [#allocation4]
    $region13: #{tpu_custom_call.1} parent=1 // pred_fallthru
      _
    // Predicated region
    $region14: #{tpu_custom_call.1} parent=1 // pred_check
      _
    $region15: #{tpu_custom_call.1} parent=1 // pred_check_branch
      %37 = sbr.rel (0) target = $region17
    $region16: #{tpu_custom_call.1} parent=1 // pred_region
      %39 = dma.done [#allocation4], 128
    $region17: #{tpu_custom_call.1} parent=1 // pred_fallthru
      _
    %40 = vsyncpa [#allocation3], 1
    %41 = vsyncpa [#allocation4], 1

// kernel: _policy_forward_impl.1
$region0: #{_policy_forward_impl.1}
  #allocation0 [shape = 'u32[]', space=smem, size = 0x4, offset = 0x4, fixed_abs, tag = 'smem constant byte address 0x4 - core index']
  #allocation1 [shape = 'u32[72,128]{1,0:T(1,128)}', space=vmem, size = 0x9000, scoped, tag = 'internal scratch']
  #allocation2 [shape = 'f32[2,32]{1,0:T(2,128)}', space=vmem, size = 0x400, scoped, tag = 'scratch operand']
  %s0 = inlined_call_operand.hbm [shape: f32[2,8], index: 0, kind: input, shape index: {}]
  %s1 = inlined_call_operand.hbm [shape: f32[8,32], index: 1, kind: input, shape index: {}]
  %s2 = inlined_call_operand.vmem [shape: f32[1,32], index: 2, kind: input, shape index: {}]
  %s3 = inlined_call_operand.hbm [shape: f32[32,128], index: 3, kind: input, shape index: {}]
  %s4 = inlined_call_operand.vmem [shape: f32[1,128], index: 4, kind: input, shape index: {}]
  %s5 = inlined_call_operand.hbm [shape: f32[2,128], index: 5, kind: output, shape index: {}]
  %s6 = sld [smem:[#allocation0]]
  $region46: #{_policy_forward_impl.1} parent=0
    _
  %s8 = ssub.s32 1, %s6
  %s9 = scalar_select 0, %s8, %s6
  $region1: #{_policy_forward_impl.1} parent=0
    #allocation3 [shape = 'u8[1024]{0}', space=vmem, size = 0x400, scoped, tag = 'input window, operand 0, single buffered']
    #allocation4 [shape = 's32[1]{0}', space=sflag, size = 0x4, scoped, tag = 'scoped memory for _policy_forward_impl.1']
    #allocation5 [shape = 's32[1]{0}', space=sflag, size = 0x4, scoped, tag = 'scoped memory for _policy_forward_impl.1']
    #allocation6 [shape = 'u8[4096]{0}', space=vmem, size = 0x1000, scoped, tag = 'input window, operand 1, single buffered']
    #allocation7 [shape = 's32[1]{0}', space=sflag, size = 0x4, scoped, tag = 'scoped memory for _policy_forward_impl.1']
    #allocation8 [shape = 'u8[16384]{0}', space=vmem, size = 0x4000, scoped, tag = 'input window, operand 3, single buffered']
    #allocation9 [shape = 'u8[1024]{0}', space=vmem, size = 0x400, scoped, tag = 'output window, operand 0, single buffered']
    %10 = vsyncpa [#allocation4], 0
    %11 = vsyncpa [#allocation7], 0
    %12 = vsyncpa [#allocation5], 0
    // Predicated region
    $region2: #{_policy_forward_impl.1} parent=1 // pred_check
      _
    $region3: #{_policy_forward_impl.1} parent=1 // pred_check_branch
      %14 = sbr.rel (0) target = $region5
    $region4: #{_policy_forward_impl.1} parent=1 // pred_region
      %16 = vsyncadd [#allocation4], 0
      %s18 = sshll.u32 %s0, 4
      %s19 = int_to_ptr.hbm [resolvable:$true] %s18
      %s20 = sshll.u32 [#allocation3], 4
      %s21 = int_to_ptr.vmem [resolvable:$true] %s20
      %23 = dma.hbm_to_vmem [thread:$0]  %s19, 32, %s21, [#allocation4]
    $region5: #{_policy_forward_impl.1} parent=1 // pred_fallthru
      _
    // Predicated region
    $region6: #{_policy_forward_impl.1} parent=1 // pred_check
      _
    $region7: #{_policy_forward_impl.1} parent=1 // pred_check_branch
      %25 = sbr.rel (0) target = $region9
    $region8: #{_policy_forward_impl.1} parent=1 // pred_region
      %27 = vsyncadd [#allocation7], 0
      %s29 = sshll.u32 %s1, 4
      %s30 = int_to_ptr.hbm [resolvable:$true] %s29
      %s31 = sshll.u32 [#allocation6], 4
      %s32 = int_to_ptr.vmem [resolvable:$true] %s31
      %34 = dma.hbm_to_vmem [thread:$0]  %s30, 128, %s32, [#allocation7]
    $region9: #{_policy_forward_impl.1} parent=1 // pred_fallthru
      _
    // Predicated region
    $region10: #{_policy_forward_impl.1} parent=1 // pred_check
      _
    $region11: #{_policy_forward_impl.1} parent=1 // pred_check_branch
      %36 = sbr.rel (0) target = $region13
    $region12: #{_policy_forward_impl.1} parent=1 // pred_region
      _
    $region13: #{_policy_forward_impl.1} parent=1 // pred_fallthru
      _
    // Predicated region
    $region14: #{_policy_forward_impl.1} parent=1 // pred_check
      _
    $region15: #{_policy_forward_impl.1} parent=1 // pred_check_branch
      %38 = sbr.rel (0) target = $region17
    $region16: #{_policy_forward_impl.1} parent=1 // pred_region
      %s39 = sadd.s32 0, 0
      %41 = vsyncadd [#allocation7], 0
      %s42 = smul.addr %s39, 8
      %s43 = scalar_lea.hbm %s3, %s42
      %s44 = sshll.u32 %s43, 4
      %s45 = int_to_ptr.hbm [resolvable:$true] %s44
      %s46 = sshll.u32 [#allocation8], 4
      %s47 = int_to_ptr.vmem [resolvable:$true] %s46
      %52 = dma.hbm_to_vmem [thread:$0]  %s45, 512, %s47, [#allocation7], 128, 128, 8
    $region17: #{_policy_forward_impl.1} parent=1 // pred_fallthru
      _
    // Predicated region
    $region18: #{_policy_forward_impl.1} parent=1 // pred_check
      _
    $region19: #{_policy_forward_impl.1} parent=1 // pred_check_branch
      %54 = sbr.rel (0) target = $region21
    $region20: #{_policy_forward_impl.1} parent=1 // pred_region
      %s55 = sadd.s32 0, 0
      %p56 = scmp.lt.s32.totalorder %s55, 0
      %s57 = scalar_select %p56, %s55, 0
      %s58 = scalar_lea.vmem %s4, %s57
      %s59 = sadd.s32 0, 0
    $region21: #{_policy_forward_impl.1} parent=1 // pred_fallthru
      _
    // Predicated region
    $region22: #{_policy_forward_impl.1} parent=1 // pred_check
      _
    $region23: #{_policy_forward_impl.1} parent=1 // pred_check_branch
      %61 = sbr.rel (0) target = $region25
    $region24: #{_policy_forward_impl.1} parent=1 // pred_region
      %63 = dma.done [#allocation4], 32
    $region25: #{_policy_forward_impl.1} parent=1 // pred_fallthru
      _
    // Predicated region
    $region26: #{_policy_forward_impl.1} parent=1 // pred_check
      _
    $region27: #{_policy_forward_impl.1} parent=1 // pred_check_branch
      %65 = sbr.rel (0) target = $region29
    $region28: #{_policy_forward_impl.1} parent=1 // pred_region
      %67 = dma.done [#allocation7], 128
    $region29: #{_policy_forward_impl.1} parent=1 // pred_fallthru
      _
    // Predicated region
    $region30: #{_policy_forward_impl.1} parent=1 // pred_check
      _
    $region31: #{_policy_forward_impl.1} parent=1 // pred_check_branch
      %69 = sbr.rel (0) target = $region33
    $region32: #{_policy_forward_impl.1} parent=1 // pred_region
      %71 = dma.done [#allocation7], 512
    $region33: #{_policy_forward_impl.1} parent=1 // pred_fallthru
      _
    %s72 = sadd.s32 0, 0
    %p73 = scmp.lt.s32.totalorder %s72, 0
    %s74 = scalar_select %p73, %s72, 0
    %s75 = scalar_lea.vmem %s4, %s74
    %s76 = sadd.s32 0, 0
    %s77 = sadd.s32 0, 0
    %p78 = scmp.lt.s32.totalorder %s77, 0
    %s79 = scalar_select %p78, %s77, 0
    %s80 = scalar_lea.vmem %s4, %s79
    %s81 = sadd.s32 0, 0
    %s82 = sadd.s32 0, 0
    %p83 = scmp.eq.s32.totalorder 0, 0
    // Predicated region
    $region34: #{_policy_forward_impl.1} parent=1 // pred_check
      %p84 = pneg %p83
    $region35: #{_policy_forward_impl.1} parent=1 // pred_check_branch
      %86 = sbr.rel (%p84) target = $region37
    $region36: #{_policy_forward_impl.1} parent=1 // pred_region
      %v87 = vld [vmem:[#allocation3] sm:$0x3]
      %v88 = vld [vmem:[#allocation6] sm:$0xff]
      %v89 = vld [vmem:[%s2] sm:$0x1]
      %v91 = vperm.slane %v89, 0
      %vm93 = vcmask 64512
      %v95 = vsel %vm93, %v87, 0
      %97 = vmatpush.msra.mxu0 0.0
      %98 = vmatpush.msra.mxu0 0.0
      %99 = vmatpush.msra.mxu0 0.0
      %100 = vmatpush.msra.mxu0 0.0
      %101 = vmatpush.msra.mxu0 0.0
      %102 = vmatpush.msra.mxu0 0.0
      %103 = vmatpush.msra.mxu0 0.0
      %104 = vmatpush.msra.mxu0 0.0
      %105 = vmatpush.msra.mxu0 0.0
      %106 = vmatpush.msra.mxu0 0.0
      %107 = vmatpush.msra.mxu0 0.0
      %108 = vmatpush.msra.mxu0 0.0
      %109 = vmatpush.msra.mxu0 0.0
      %110 = vmatpush.msra.mxu0 0.0
      %111 = vmatpush.msra.mxu0 0.0
      %112 = vmatpush.msra.mxu0 %v88
      %113 = vmatmul.f32.gmra.mxu0 %v95
      %v114 = vpop.f32.mrf.mxu0
      %v115 = vadd.f32 %v91, %v114
      %116 = vdwg.mxu0
      %v117 = vmax.f32 %v115, 0.0
      %vm118 = vcmask 254976
      %119 = vst.msk [vmem:[#allocation2] sm:$0x3] %vm118, %v117
    $region37: #{_policy_forward_impl.1} parent=1 // pred_fallthru
      _
    %v120 = vld [vmem:[#allocation2] sm:$0x3]
    %v121 = vld [vmem:[#allocation8] sm:$0xff]
    %v122 = vld [vmem:[#allocation8 + $0x8] sm:$0xff]
    %v123 = vld [vmem:[#allocation8 + $0x10] sm:$0xff]
    %v124 = vld [vmem:[#allocation8 + $0x18] sm:$0xff]
    %v125 = vld [vmem:[%s80] sm:$0x1]
    %v127 = vperm.slane %v125, 0
    %vm129 = vcmask 261120
    %v131 = vsel %vm129, %v120, 0
    %133 = vmatpush.msra.mxu0 0.0
    %134 = vmatpush.msra.mxu0 0.0
    %135 = vmatpush.msra.mxu0 0.0
    %136 = vmatpush.msra.mxu0 0.0
    %137 = vmatpush.msra.mxu0 0.0
    %138 = vmatpush.msra.mxu0 0.0
    %139 = vmatpush.msra.mxu0 0.0
    %140 = vmatpush.msra.mxu0 0.0
    %141 = vmatpush.msra.mxu0 0.0
    %142 = vmatpush.msra.mxu0 0.0
    %143 = vmatpush.msra.mxu0 0.0
    %144 = vmatpush.msra.mxu0 0.0
    %145 = vmatpush.msra.mxu0 %v124
    %146 = vmatpush.msra.mxu0 %v123
    %147 = vmatpush.msra.mxu0 %v122
    %148 = vmatpush.msra.mxu0 %v121
    %149 = vmatmul.f32.gmra.mxu0 %v131
    %v150 = vpop.f32.mrf.mxu0
    %v151 = vadd.f32 %v127, %v150
    %152 = vdwg.mxu0
    %vm153 = vcmask 1041408
    %v154 = vsel %vm153, %v151, -inf
    %v155 = vrot.slane %v154, 4
    %v156 = vmax.f32 %v154, %v155
    %v157 = vrot.slane %v156, 2
    %v158 = vmax.f32 %v156, %v157
    %v159 = vrot.slane %v158, 1
    %v160 = vmax.f32 %v158, %v159
    %v161 = vsub.f32 %v151, %v160
    %v162 = vmul.f32 %v161, 1.442695
    %v163 = vpow.pop %v162
    %v164 = vsel %vm153, %v163, 0.0
    %v165 = vrot.slane %v164, 4
    %v166 = vadd.f32 %v164, %v165
    %v167 = vrot.slane %v166, 2
    %v168 = vadd.f32 %v166, %v167
    %v169 = vrot.slane %v168, 1
    %v170 = vadd.f32 %v168, %v169
    %v171 = vrcp.pop %v170
    %v172 = vmul.f32 %v163, %v171
    %173 = vst [vmem:[#allocation9] sm:$0x3] %v172
    // Predicated region
    $region38: #{_policy_forward_impl.1} parent=1 // pred_check
      _
    $region39: #{_policy_forward_impl.1} parent=1 // pred_check_branch
      %175 = sbr.rel (0) target = $region41
    $region40: #{_policy_forward_impl.1} parent=1 // pred_region
      %s176 = sadd.s32 0, 0
      %178 = vsyncadd [#allocation5], 0
      %s179 = smul.addr %s176, 2
      %s180 = scalar_lea.hbm %s5, %s179
      %s182 = sshll.u32 [#allocation9], 4
      %s183 = int_to_ptr.vmem [resolvable:$true] %s182
      %s184 = sshll.u32 %s180, 4
      %s185 = int_to_ptr.hbm [resolvable:$true] %s184
      %187 = dma.vmem_to_hbm [thread:$0]  %s183, 32, %s185, [#allocation5]
    $region41: #{_policy_forward_impl.1} parent=1 // pred_fallthru
      _
    // Predicated region
    $region42: #{_policy_forward_impl.1} parent=1 // pred_check
      _
    $region43: #{_policy_forward_impl.1} parent=1 // pred_check_branch
      %189 = sbr.rel (0) target = $region45
    $region44: #{_policy_forward_impl.1} parent=1 // pred_region
      %191 = dma.done [#allocation5], 32
    $region45: #{_policy_forward_impl.1} parent=1 // pred_fallthru
      _
    %192 = vsyncpa [#allocation4], 1
    %193 = vsyncpa [#allocation7], 1
    %194 = vsyncpa [#allocation5], 1

</llo_original>
